<compile_context>
chip_gen: v7x
topology: tpu7x:2x2x1
jax: 0.10.0
libtpu: 0.0.40
codegen_flags: <defaults>
</compile_context>

<pallas_src>
import functools

import jax
import jax.numpy as jnp
from jax.experimental import pallas as pl
from jax.experimental.pallas import tpu as pltpu


def _round_up(x, m):
    return ((x + m - 1) // m) * m


def _heatmap_interact_loss_kernel(hm_ref, hmt_ref, x_ref, w_ref, b_ref,
                                  tgt_ref, out_ref, *, num_classes):
    # ---------------- heatmap branch: soft-target cross entropy -------------
    # CE_i = (m_i + lse_i) * sum_j t_j  -  sum_j t_j * hm_ij
    hm = hm_ref[...].astype(jnp.float32)                      # (TB, N)
    hmt = hmt_ref[...].astype(jnp.float32)                    # (1,  N)
    m = jnp.max(hm, axis=-1, keepdims=True)                   # (TB, 1)
    lse = jnp.log(jnp.sum(jnp.exp(hm - m), axis=-1, keepdims=True))
    tgt_mass = jnp.sum(hmt)                                   # == 1 for softmax targets
    cross = jnp.sum(hm * hmt, axis=-1, keepdims=True)         # (TB, 1)
    hm_loss = (m + lse) * tgt_mass - cross                    # (TB, 1)

    # ------------- interact branch: fc -> relu -> class-index CE ------------
    x = x_ref[...].astype(jnp.float32)                        # (TB, Kp)
    w = w_ref[...].astype(jnp.float32)                        # (Kp, Cp) zero-padded
    b = b_ref[...].astype(jnp.float32)                        # (1,  Cp) zero-padded
    logits = jnp.dot(x, w, preferred_element_type=jnp.float32) + b
    logits = jnp.maximum(logits, 0.0)                         # ReLU
    lane = jax.lax.broadcasted_iota(jnp.int32, logits.shape, 1)
    logits = jnp.where(lane < num_classes, logits, jnp.float32(-1e30))
    m2 = jnp.max(logits, axis=-1, keepdims=True)
    lse2 = jnp.log(jnp.sum(jnp.exp(logits - m2), axis=-1, keepdims=True))
    tgt = tgt_ref[...]                                        # (TB, 1) int32
    tgt_logit = jnp.sum(jnp.where(lane == tgt, logits, 0.0),
                        axis=-1, keepdims=True)               # (TB, 1)
    inter_loss = (m2 + lse2) - tgt_logit                      # (TB, 1)

    # ------------------ per-tile partial sum (lane-dense store) -------------
    partial = jnp.sum(hm_loss + inter_loss)                   # scalar for this tile
    out_ref[...] = jnp.broadcast_to(partial, out_ref.shape).astype(jnp.float32)


def heatmap_interact_loss(heatmap, heatmap_true, interact, interact_true,
                          fc_w, fc_b, *, block_b=None):
    """heatmap: (B,C,H,W); heatmap_true: (1,C,H,W); interact: (B,...)->60 feats;
    interact_true: (B,) int class ids; fc_w: (7,60); fc_b: (7,). Returns scalar."""
    B = heatmap.shape[0]
    hm_flat = heatmap.reshape(B, -1)          # source dtype preserved across DMA
    hmt_flat = heatmap_true.reshape(1, -1)
    x_flat = interact.reshape(B, -1)
    N = hm_flat.shape[1]
    K = x_flat.shape[1]
    num_classes = fc_w.shape[0]

    # Pad the tiny fc operands to a lane-dense MXU tile (K -> mult. of 8, C -> 128).
    kp = _round_up(K, 8)
    cp = _round_up(num_classes, 128)
    x_p = jnp.pad(x_flat, ((0, 0), (0, kp - K)))
    w_p = jnp.pad(fc_w.T, ((0, kp - K), (0, cp - num_classes)))
    b_p = jnp.pad(fc_b.reshape(1, -1), ((0, 0), (0, cp - num_classes)))
    # NOTE: out-of-range labels are not checked (PyTorch would raise); one-hot
    # is replaced by an in-kernel iota==target mask.
    tgt = interact_true.astype(jnp.int32).reshape(B, 1)

    # Batch tile: largest multiple of 8 (<=128) dividing B that keeps the
    # heatmap block <= ~4 MiB, so double-buffering stays within the default
    # scoped VMEM limits and v7x's 64 MiB physical VMEM.
    if block_b is None:
        budget = 4 * 1024 * 1024
        tb = min(128, max(8, budget // max(1, N * hm_flat.dtype.itemsize)))
        tb = max(8, (tb // 8) * 8)
    else:
        tb = block_b
    if B < 8 or B % tb != 0:
        tb = B        # full-batch block (block == array dim is always legal)
    grid = (B // tb,)
    # TODO(synk): add a second "arbitrary" grid axis over N with online-softmax
    # accumulation if C*H*W ever outgrows the per-block VMEM budget.

    partials = pl.pallas_call(
        functools.partial(_heatmap_interact_loss_kernel, num_classes=num_classes),
        out_shape=jax.ShapeDtypeStruct((grid[0], 1, 128), jnp.float32),
        grid=grid,
        in_specs=[
            pl.BlockSpec((tb, N), lambda i: (i, 0)),     # heatmap slab (pipelined)
            pl.BlockSpec((1, N), lambda i: (0, 0)),      # soft target (resident)
            pl.BlockSpec((tb, kp), lambda i: (i, 0)),    # interact features
            pl.BlockSpec((kp, cp), lambda i: (0, 0)),    # fc weight (padded)
            pl.BlockSpec((1, cp), lambda i: (0, 0)),     # fc bias (padded)
            pl.BlockSpec((tb, 1), lambda i: (i, 0)),     # int32 class targets
        ],
        out_specs=pl.BlockSpec((1, 1, 128), lambda i: (i, 0, 0)),
        compiler_params=pltpu.CompilerParams(
            dimension_semantics=("parallel",),
            vmem_limit_bytes=48 * 1024 * 1024),
    )(hm_flat, hmt_flat, x_p, w_p, b_p, tgt)

    # Both CE terms use 'mean' reduction over the batch.
    return jnp.sum(partials[:, 0, 0]) / B


def _reference(heatmap, heatmap_true, interact, interact_true, fc_w, fc_b):
    """Pure-JAX reference mirroring the PyTorch forward."""
    B = heatmap.shape[0]
    hm = heatmap.reshape(B, -1).astype(jnp.float32)
    hmt = jnp.tile(heatmap_true.reshape(1, -1).astype(jnp.float32), (B, 1))
    logp = jax.nn.log_softmax(hm, axis=-1)
    hm_loss = jnp.mean(-jnp.sum(hmt * logp, axis=-1))

    x = interact.reshape(B, -1).astype(jnp.float32)
    logits = jax.nn.relu(x @ fc_w.T + fc_b)
    logp2 = jax.nn.log_softmax(logits, axis=-1)
    inter_loss = jnp.mean(-jnp.take_along_axis(
        logp2, interact_true[:, None].astype(jnp.int32), axis=-1)[:, 0])
    return hm_loss + inter_loss


if __name__ == "__main__":
    key = jax.random.PRNGKey(0)
    k_hm, k_hmt, k_int, k_tgt, k_w, k_b = jax.random.split(key, 6)

    B, C, H, W = 2, 4, 16, 16          # heatmap.flatten(1) -> (B, 1024)
    # heatmap / interact kept in bf16: the kernel DMAs the source dtype and
    # only up-casts to f32 inside VMEM (halves the dominant HBM transfer).
    heatmap = jax.random.normal(k_hm, (B, C, H, W), jnp.float32).astype(jnp.bfloat16)
    hmt_logits = jax.random.normal(k_hmt, (1, C, H, W), dtype=jnp.float32)
    heatmap_true = jax.nn.softmax(hmt_logits.reshape(1, -1), axis=-1).reshape(1, C, H, W)

    interact = jax.random.normal(k_int, (B, 12, 5), jnp.float32).astype(jnp.bfloat16)
    interact_true = jax.random.randint(k_tgt, (B,), 0, 7, dtype=jnp.int32)

    # Deterministic Linear(60, 7) parameters (torch-style uniform init bound).
    bound = 1.0 / (60.0 ** 0.5)
    fc_w = jax.random.uniform(k_w, (7, 60), jnp.float32, -bound, bound)
    fc_b = jax.random.uniform(k_b, (7,), jnp.float32, -bound, bound)

    loss = heatmap_interact_loss(heatmap, heatmap_true, interact,
                                 interact_true, fc_w, fc_b)
    loss = jax.block_until_ready(loss)

    ref = _reference(heatmap, heatmap_true, interact, interact_true, fc_w, fc_b)
    assert jnp.allclose(loss, ref, rtol=1e-4, atol=1e-4), (loss, ref)

    print("KERNEL_OK")
</pallas_src>

<mosaic_0001>
module attributes {stable_mosaic.version = 11 : i64} {
  func.func @_heatmap_interact_loss_kernel(%arg0: i32, %arg1: memref<2x1024xbf16, #tpu.memory_space<vmem>>, %arg2: memref<1x1024xf32, #tpu.memory_space<vmem>>, %arg3: memref<2x64xbf16, #tpu.memory_space<vmem>>, %arg4: memref<64x128xf32, #tpu.memory_space<vmem>>, %arg5: memref<1x128xf32, #tpu.memory_space<vmem>>, %arg6: memref<2x1xi32, #tpu.memory_space<vmem>>, %arg7: memref<1x1x128xf32, #tpu.memory_space<vmem>>) attributes {dimension_semantics = [#tpu.dimension_semantics<parallel>], iteration_bounds = array<i64: 1>, scalar_prefetch = 0 : i64, scratch_operands = 0 : i64, tpu.core_type = #tpu.core_type<tc>, window_params = [{transform_indices = @transform_0, window_bounds = array<i64: 2, 1024>}, {pipeline_mode = #tpu.pipeline_mode<synchronous>, transform_indices = @transform_1, window_bounds = array<i64: 1, 1024>}, {transform_indices = @transform_2, window_bounds = array<i64: 2, 64>}, {pipeline_mode = #tpu.pipeline_mode<synchronous>, transform_indices = @transform_3, window_bounds = array<i64: 64, 128>}, {pipeline_mode = #tpu.pipeline_mode<synchronous>, transform_indices = @transform_4, window_bounds = array<i64: 1, 128>}, {transform_indices = @transform_5, window_bounds = array<i64: 2, 1>}, {transform_indices = @transform_6, window_bounds = array<i64: 1, 1, 128>}]} {
    %c0 = arith.constant 0 : index
    %c0_0 = arith.constant 0 : index
    %0 = vector.load %arg1[%c0, %c0_0] : memref<2x1024xbf16, #tpu.memory_space<vmem>>, vector<2x1024xbf16>
    %1 = arith.extf %0 : vector<2x1024xbf16> to vector<2x1024xf32>
    %c0_1 = arith.constant 0 : index
    %c0_2 = arith.constant 0 : index
    %2 = vector.load %arg2[%c0_1, %c0_2] : memref<1x1024xf32, #tpu.memory_space<vmem>>, vector<1x1024xf32>
    %cst = arith.constant dense<0xFF800000> : vector<2xf32>
    %3 = vector.multi_reduction <maximumf>, %1, %cst [1] : vector<2x1024xf32> to vector<2xf32>
    %4 = vector.shape_cast %3 : vector<2xf32> to vector<2x1xf32>
    %5 = vector.broadcast %4 : vector<2x1xf32> to vector<2x1024xf32>
    %6 = arith.subf %1, %5 : vector<2x1024xf32>
    %7 = math.exp %6 : vector<2x1024xf32>
    %cst_3 = arith.constant dense<0.000000e+00> : vector<2xf32>
    %8 = vector.multi_reduction <add>, %7, %cst_3 [1] : vector<2x1024xf32> to vector<2xf32>
    %9 = vector.shape_cast %8 : vector<2xf32> to vector<2x1xf32>
    %10 = math.log %9 : vector<2x1xf32>
    %11 = vector.shape_cast %2 : vector<1x1024xf32> to vector<1x1x1024xf32>
    %cst_4 = arith.constant dense<0.000000e+00> : vector<1xf32>
    %12 = vector.multi_reduction <add>, %11, %cst_4 [1, 2] : vector<1x1x1024xf32> to vector<1xf32>
    %13 = vector.shape_cast %12 : vector<1xf32> to vector<1x1x1xf32>
    %14 = vector.extract %13[0, 0, 0] : f32 from vector<1x1x1xf32>
    %15 = vector.broadcast %2 : vector<1x1024xf32> to vector<2x1024xf32>
    %16 = arith.mulf %1, %15 : vector<2x1024xf32>
    %cst_5 = arith.constant dense<0.000000e+00> : vector<2xf32>
    %17 = vector.multi_reduction <add>, %16, %cst_5 [1] : vector<2x1024xf32> to vector<2xf32>
    %18 = vector.shape_cast %17 : vector<2xf32> to vector<2x1xf32>
    %19 = arith.addf %4, %10 : vector<2x1xf32>
    %20 = vector.broadcast %14 : f32 to vector<2x1xf32>
    %21 = arith.mulf %19, %20 : vector<2x1xf32>
    %22 = arith.subf %21, %18 : vector<2x1xf32>
    %c0_6 = arith.constant 0 : index
    %c0_7 = arith.constant 0 : index
    %23 = vector.load %arg3[%c0_6, %c0_7] : memref<2x64xbf16, #tpu.memory_space<vmem>>, vector<2x64xbf16>
    %24 = arith.extf %23 : vector<2x64xbf16> to vector<2x64xf32>
    %c0_8 = arith.constant 0 : index
    %c0_9 = arith.constant 0 : index
    %25 = vector.load %arg4[%c0_8, %c0_9] : memref<64x128xf32, #tpu.memory_space<vmem>>, vector<64x128xf32>
    %c0_10 = arith.constant 0 : index
    %c0_11 = arith.constant 0 : index
    %26 = vector.load %arg5[%c0_10, %c0_11] : memref<1x128xf32, #tpu.memory_space<vmem>>, vector<1x128xf32>
    %cst_12 = arith.constant dense<0.000000e+00> : vector<2x128xf32>
    %27 = tpu.matmul %24, %25, %cst_12 {dimension_numbers = #tpu.dot_dimension_numbers<[1], [0], [0], [1], [0, 0, 1, 1], [], []>} : vector<2x64xf32>, vector<64x128xf32>, vector<2x128xf32> -> vector<2x128xf32>
    %28 = vector.broadcast %26 : vector<1x128xf32> to vector<2x128xf32>
    %29 = arith.addf %27, %28 : vector<2x128xf32>
    %cst_13 = arith.constant 0.000000e+00 : f32
    %30 = vector.broadcast %cst_13 : f32 to vector<2x128xf32>
    %31 = arith.maximumf %29, %30 : vector<2x128xf32>
    %32 = tpu.iota {dimensions = array<i32: 1>} : vector<2x128xi32>
    %c7_i32 = arith.constant 7 : i32
    %33 = vector.broadcast %c7_i32 : i32 to vector<2x128xi32>
    %34 = arith.cmpi slt, %32, %33 : vector<2x128xi32>
    %cst_14 = arith.constant -1.000000e+30 : f32
    %35 = vector.broadcast %cst_14 : f32 to vector<2x128xf32>
    %36 = arith.select %34, %31, %35 : vector<2x128xi1>, vector<2x128xf32>
    %cst_15 = arith.constant dense<0xFF800000> : vector<2xf32>
    %37 = vector.multi_reduction <maximumf>, %36, %cst_15 [1] : vector<2x128xf32> to vector<2xf32>
    %38 = vector.shape_cast %37 : vector<2xf32> to vector<2x1xf32>
    %39 = vector.broadcast %38 : vector<2x1xf32> to vector<2x128xf32>
    %40 = arith.subf %36, %39 : vector<2x128xf32>
    %41 = math.exp %40 : vector<2x128xf32>
    %cst_16 = arith.constant dense<0.000000e+00> : vector<2xf32>
    %42 = vector.multi_reduction <add>, %41, %cst_16 [1] : vector<2x128xf32> to vector<2xf32>
    %43 = vector.shape_cast %42 : vector<2xf32> to vector<2x1xf32>
    %44 = math.log %43 : vector<2x1xf32>
    %c0_17 = arith.constant 0 : index
    %c0_18 = arith.constant 0 : index
    %45 = vector.load %arg6[%c0_17, %c0_18] : memref<2x1xi32, #tpu.memory_space<vmem>>, vector<2x1xi32>
    %46 = vector.broadcast %45 : vector<2x1xi32> to vector<2x128xi32>
    %47 = arith.cmpi eq, %32, %46 : vector<2x128xi32>
    %cst_19 = arith.constant 0.000000e+00 : f32
    %48 = vector.broadcast %cst_19 : f32 to vector<2x128xf32>
    %49 = arith.select %47, %36, %48 : vector<2x128xi1>, vector<2x128xf32>
    %cst_20 = arith.constant dense<0.000000e+00> : vector<2xf32>
    %50 = vector.multi_reduction <add>, %49, %cst_20 [1] : vector<2x128xf32> to vector<2xf32>
    %51 = vector.shape_cast %50 : vector<2xf32> to vector<2x1xf32>
    %52 = arith.addf %38, %44 : vector<2x1xf32>
    %53 = arith.subf %52, %51 : vector<2x1xf32>
    %54 = arith.addf %22, %53 : vector<2x1xf32>
    %55 = vector.shape_cast %54 : vector<2x1xf32> to vector<1x2x1xf32>
    %cst_21 = arith.constant dense<0.000000e+00> : vector<1xf32>
    %56 = vector.multi_reduction <add>, %55, %cst_21 [1, 2] : vector<1x2x1xf32> to vector<1xf32>
    %57 = vector.shape_cast %56 : vector<1xf32> to vector<1x1x1xf32>
    %58 = vector.extract %57[0, 0, 0] : f32 from vector<1x1x1xf32>
    %59 = vector.broadcast %58 : f32 to vector<1x1x128xf32>
    %c0_22 = arith.constant 0 : index
    %c0_23 = arith.constant 0 : index
    %c0_24 = arith.constant 0 : index
    %60 = vector.load %arg7[%c0_22, %c0_23, %c0_24] : memref<1x1x128xf32, #tpu.memory_space<vmem>>, vector<1x1x128xf32>
    tpu.vector_store %arg7[%c0_22, %c0_23, %c0_24], %59 {strides = array<i32>} : memref<1x1x128xf32, #tpu.memory_space<vmem>>, vector<1x1x128xf32>,
    return
  }
  func.func @transform_0(%arg0: i32) -> (i32, i32) {
    %c0_i32 = arith.constant 0 : i32
    %c0_i32_0 = arith.constant 0 : i32
    return %arg0, %c0_i32 : i32, i32
  }
  func.func @transform_1(%arg0: i32) -> (i32, i32) {
    %c0_i32 = arith.constant 0 : i32
    %c0_i32_0 = arith.constant 0 : i32
    %c0_i32_1 = arith.constant 0 : i32
    return %c0_i32, %c0_i32_0 : i32, i32
  }
  func.func @transform_2(%arg0: i32) -> (i32, i32) {
    %c0_i32 = arith.constant 0 : i32
    %c0_i32_0 = arith.constant 0 : i32
    return %arg0, %c0_i32 : i32, i32
  }
  func.func @transform_3(%arg0: i32) -> (i32, i32) {
    %c0_i32 = arith.constant 0 : i32
    %c0_i32_0 = arith.constant 0 : i32
    %c0_i32_1 = arith.constant 0 : i32
    return %c0_i32, %c0_i32_0 : i32, i32
  }
  func.func @transform_4(%arg0: i32) -> (i32, i32) {
    %c0_i32 = arith.constant 0 : i32
    %c0_i32_0 = arith.constant 0 : i32
    %c0_i32_1 = arith.constant 0 : i32
    return %c0_i32, %c0_i32_0 : i32, i32
  }
  func.func @transform_5(%arg0: i32) -> (i32, i32) {
    %c0_i32 = arith.constant 0 : i32
    %c0_i32_0 = arith.constant 0 : i32
    return %arg0, %c0_i32 : i32, i32
  }
  func.func @transform_6(%arg0: i32) -> (i32, i32, i32) {
    %c0_i32 = arith.constant 0 : i32
    %c0_i32_0 = arith.constant 0 : i32
    %c0_i32_1 = arith.constant 0 : i32
    return %arg0, %c0_i32, %c0_i32_0 : i32, i32, i32
  }
}

</mosaic_0001>

<llo_original>
// kernel: tpu_custom_call.1
$region0: #{tpu_custom_call.1}
  #allocation0 [shape = 'u32[]', space=smem, size = 0x4, offset = 0x4, fixed_abs, tag = 'smem constant byte address 0x4 - core index']
  #allocation1 [shape = 'u32[144,128]{1,0:T(1,128)}', space=vmem, size = 0x12000, scoped, tag = 'internal scratch']
  %s0 = inlined_call_operand.hbm [shape: bf16[2,1024], index: 0, kind: input, shape index: {}]
  %s1 = inlined_call_operand.hbm [shape: f32[1,1024], index: 1, kind: input, shape index: {}]
  %s2 = inlined_call_operand.vmem [shape: bf16[2,64], index: 2, kind: input, shape index: {}]
  %s3 = inlined_call_operand.hbm [shape: f32[64,128], index: 3, kind: input, shape index: {}]
  %s4 = inlined_call_operand.vmem [shape: f32[1,128], index: 4, kind: input, shape index: {}]
  %s5 = inlined_call_operand.vmem [shape: s32[2,1], index: 5, kind: input, shape index: {}]
  %s6 = inlined_call_operand.hbm [shape: f32[1,1,128], index: 6, kind: output, shape index: {}]
  %s7 = sld [smem:[#allocation0]]
  $region46: #{tpu_custom_call.1} parent=0
    _
  %s9 = ssub.s32 1, %s7
  %s10 = scalar_select 0, %s9, %s7
  $region1: #{tpu_custom_call.1} parent=0
    #allocation2 [shape = 'u8[4096]{0}', space=vmem, size = 0x1000, scoped, tag = 'input window, operand 0, single buffered']
    #allocation3 [shape = 's32[1]{0}', space=sflag, size = 0x4, scoped, tag = 'scoped memory for tpu_custom_call.1']
    #allocation4 [shape = 's32[1]{0}', space=sflag, size = 0x4, scoped, tag = 'scoped memory for tpu_custom_call.1']
    #allocation5 [shape = 'u8[4096]{0}', space=vmem, size = 0x1000, scoped, tag = 'input window, operand 1, single buffered']
    #allocation6 [shape = 's32[1]{0}', space=sflag, size = 0x4, scoped, tag = 'scoped memory for tpu_custom_call.1']
    #allocation7 [shape = 'u8[32768]{0}', space=vmem, size = 0x8000, scoped, tag = 'input window, operand 3, single buffered']
    #allocation8 [shape = 'u8[512]{0}', space=vmem, size = 0x400, scoped, tag = 'output window, operand 0, single buffered']
    %11 = vsyncpa [#allocation3], 0
    %12 = vsyncpa [#allocation6], 0
    %13 = vsyncpa [#allocation4], 0
    // Predicated region
    $region2: #{tpu_custom_call.1} parent=1 // pred_check
      _
    $region3: #{tpu_custom_call.1} parent=1 // pred_check_branch
      %15 = sbr.rel (0) target = $region5
    $region4: #{tpu_custom_call.1} parent=1 // pred_region
      %s17 = ssub.s32 128, 128
      %18 = vsyncadd [#allocation3], %s17
      %s20 = sshll.u32 [#allocation2], 4
      %s21 = int_to_ptr.vmem [resolvable:$true] %s20
      %23 = dma.hbm_to_vmem [thread:$0]  %s0, 128, %s21, [#allocation3]
    $region5: #{tpu_custom_call.1} parent=1 // pred_fallthru
      _
    // Predicated region
    $region6: #{tpu_custom_call.1} parent=1 // pred_check
      _
    $region7: #{tpu_custom_call.1} parent=1 // pred_check_branch
      %25 = sbr.rel (0) target = $region9
    $region8: #{tpu_custom_call.1} parent=1 // pred_region
      %s27 = ssub.s32 128, 128
      %28 = vsyncadd [#allocation6], %s27
      %s30 = sshll.u32 [#allocation5], 4
      %s31 = int_to_ptr.vmem [resolvable:$true] %s30
      %33 = dma.hbm_to_vmem [thread:$0]  %s1, 128, %s31, [#allocation6]
    $region9: #{tpu_custom_call.1} parent=1 // pred_fallthru
      _
    // Predicated region
    $region10: #{tpu_custom_call.1} parent=1 // pred_check
      _
    $region11: #{tpu_custom_call.1} parent=1 // pred_check_branch
      %35 = sbr.rel (0) target = $region13
    $region12: #{tpu_custom_call.1} parent=1 // pred_region
      _
    $region13: #{tpu_custom_call.1} parent=1 // pred_fallthru
      _
    // Predicated region
    $region14: #{tpu_custom_call.1} parent=1 // pred_check
      _
    $region15: #{tpu_custom_call.1} parent=1 // pred_check_branch
      %37 = sbr.rel (0) target = $region17
    $region16: #{tpu_custom_call.1} parent=1 // pred_region
      %s39 = ssub.s32 1024, 1024
      %40 = vsyncadd [#allocation6], %s39
      %s41 = sshll.u32 [#allocation7], 4
      %s42 = int_to_ptr.vmem [resolvable:$true] %s41
      %47 = dma.hbm_to_vmem [thread:$0]  %s3, 1024, %s42, [#allocation6], 128, 128, 8
    $region17: #{tpu_custom_call.1} parent=1 // pred_fallthru
      _
    // Predicated region
    $region18: #{tpu_custom_call.1} parent=1 // pred_check
      _
    $region19: #{tpu_custom_call.1} parent=1 // pred_check_branch
      %49 = sbr.rel (0) target = $region21
    $region20: #{tpu_custom_call.1} parent=1 // pred_region
      _
    $region21: #{tpu_custom_call.1} parent=1 // pred_fallthru
      _
    // Predicated region
    $region22: #{tpu_custom_call.1} parent=1 // pred_check
      _
    $region23: #{tpu_custom_call.1} parent=1 // pred_check_branch
      %51 = sbr.rel (0) target = $region25
    $region24: #{tpu_custom_call.1} parent=1 // pred_region
      _
    $region25: #{tpu_custom_call.1} parent=1 // pred_fallthru
      _
    // Predicated region
    $region26: #{tpu_custom_call.1} parent=1 // pred_check
      _
    $region27: #{tpu_custom_call.1} parent=1 // pred_check_branch
      %53 = sbr.rel (0) target = $region29
    $region28: #{tpu_custom_call.1} parent=1 // pred_region
      %54 = dma.done [#allocation3], 128
    $region29: #{tpu_custom_call.1} parent=1 // pred_fallthru
      _
    // Predicated region
    $region30: #{tpu_custom_call.1} parent=1 // pred_check
      _
    $region31: #{tpu_custom_call.1} parent=1 // pred_check_branch
      %56 = sbr.rel (0) target = $region33
    $region32: #{tpu_custom_call.1} parent=1 // pred_region
      %57 = dma.done [#allocation6], 128
    $region33: #{tpu_custom_call.1} parent=1 // pred_fallthru
      _
    // Predicated region
    $region34: #{tpu_custom_call.1} parent=1 // pred_check
      _
    $region35: #{tpu_custom_call.1} parent=1 // pred_check_branch
      %59 = sbr.rel (0) target = $region37
    $region36: #{tpu_custom_call.1} parent=1 // pred_region
      %60 = dma.done [#allocation6], 1024
    $region37: #{tpu_custom_call.1} parent=1 // pred_fallthru
      _
    %v61 = vld [vmem:[#allocation2] sm:$0xff]
    %v62 = vunpack.c.l.bf16 %v61
    %v63 = vunpack.c.h.bf16 %v61
    %v64 = vld [vmem:[#allocation5] sm:$0xff]
    %v67 = vcombine.high %v62, %v62
    %v69 = vunpack.c.l.s4 1983009808
    %v70 = vunpack.c.0.s8 %v69
    %v71 = vlaneseq
    %v72 = vshrl.u32 %v71, 7
    %v73 = vsub.s32 %v70, %v72
    %v74 = vrot.slane %v62, %v73
    %v76 = vunpack.c.l.s4 1983009808
    %v77 = vunpack.c.0.s8 %v76
    %v78 = vlaneseq
    %v79 = vshrl.u32 %v78, 7
    %v80 = vsub.s32 %v77, %v79
    %v81 = vrot.slane %v67, %v80
    %v82 = vcombine.high %v74, %v74
    %v83 = vcombine.high %v81, %v81
    %v84 = vcombine.high %v63, %v63
    %v86 = vunpack.c.l.s4 1983009808
    %v87 = vunpack.c.0.s8 %v86
    %v88 = vlaneseq
    %v89 = vshrl.u32 %v88, 7
    %v90 = vsub.s32 %v87, %v89
    %v91 = vrot.slane %v63, %v90
    %v93 = vunpack.c.l.s4 1983009808
    %v94 = vunpack.c.0.s8 %v93
    %v95 = vlaneseq
    %v96 = vshrl.u32 %v95, 7
    %v97 = vsub.s32 %v94, %v96
    %v98 = vrot.slane %v84, %v97
    %v99 = vcombine.high %v91, %v91
    %v100 = vcombine.high %v98, %v98
    %vm109 = vcmask 1041408
    %v110 = vsel %vm109, %v74, -inf
    %v111 = vsel %vm109, %v82, -inf
    %v112 = vsel %vm109, %v81, -inf
    %v113 = vsel %vm109, %v83, -inf
    %v114 = vsel %vm109, %v91, -inf
    %v115 = vmax.f32 %v110, %v114
    %v116 = vsel %vm109, %v99, -inf
    %v117 = vmax.f32 %v111, %v116
    %v118 = vsel %vm109, %v98, -inf
    %v119 = vmax.f32 %v112, %v118
    %v120 = vsel %vm109, %v100, -inf
    %v121 = vmax.f32 %v113, %v120
    %v122 = vmax.f32 %v115, %v117
    %v123 = vmax.f32 %v119, %v121
    %v124 = vmax.f32 %v122, %v123
    %125 = vmax.xlane.f32.xlu0 %v124
    %v126 = vpop.xlane.xlu0 %125
    %v129 = vunpack.c.l.s4 269488144
    %v130 = vunpack.c.0.s8 %v129
    %v131 = vlaneseq
    %v132 = vshrl.u32 %v131, 7
    %v133 = vsub.s32 %v130, %v132
    %v134 = vrot.slane %v126, %v133
    %v136 = vsub.f32 %v62, %v134
    %v137 = vsub.f32 %v63, %v134
    %v138 = vmul.f32 %v136, 1.442695
    %v139 = vpow.pop %v138
    %v140 = vmul.f32 %v137, 1.442695
    %v141 = vpow.pop %v140
    %v144 = vcombine.high %v139, %v139
    %v146 = vunpack.c.l.s4 1983009808
    %v147 = vunpack.c.0.s8 %v146
    %v148 = vlaneseq
    %v149 = vshrl.u32 %v148, 7
    %v150 = vsub.s32 %v147, %v149
    %v151 = vrot.slane %v139, %v150
    %v153 = vunpack.c.l.s4 1983009808
    %v154 = vunpack.c.0.s8 %v153
    %v155 = vlaneseq
    %v156 = vshrl.u32 %v155, 7
    %v157 = vsub.s32 %v154, %v156
    %v158 = vrot.slane %v144, %v157
    %v159 = vcombine.high %v151, %v151
    %v160 = vcombine.high %v158, %v158
    %v161 = vcombine.high %v141, %v141
    %v163 = vunpack.c.l.s4 1983009808
    %v164 = vunpack.c.0.s8 %v163
    %v165 = vlaneseq
    %v166 = vshrl.u32 %v165, 7
    %v167 = vsub.s32 %v164, %v166
    %v168 = vrot.slane %v141, %v167
    %v170 = vunpack.c.l.s4 1983009808
    %v171 = vunpack.c.0.s8 %v170
    %v172 = vlaneseq
    %v173 = vshrl.u32 %v172, 7
    %v174 = vsub.s32 %v171, %v173
    %v175 = vrot.slane %v161, %v174
    %v176 = vcombine.high %v168, %v168
    %v177 = vcombine.high %v175, %v175
    %v186 = vsel %vm109, %v151, 0.0
    %v187 = vsel %vm109, %v159, 0.0
    %v188 = vadd.f32 %v186, %v187
    %v189 = vsel %vm109, %v158, 0.0
    %v190 = vadd.f32 %v188, %v189
    %v191 = vsel %vm109, %v160, 0.0
    %v192 = vadd.f32 %v190, %v191
    %v193 = vsel %vm109, %v168, 0.0
    %v194 = vadd.f32 %v192, %v193
    %v195 = vsel %vm109, %v176, 0.0
    %v196 = vadd.f32 %v194, %v195
    %v197 = vsel %vm109, %v175, 0.0
    %v198 = vadd.f32 %v196, %v197
    %v199 = vsel %vm109, %v177, 0.0
    %v200 = vadd.f32 %v198, %v199
    %201 = vadd.xlane.f32.xlu0 %v200
    %v202 = vpop.xlane.xlu0 %201
    %v203 = vlog2.pop %v202
    %v204 = vmul.f32 %v203, 0.6931472
    %v206 = vlaneseq
    %v207 = vshrl.u32 %v206, 7
    %v208 = vsub.s32 0, %v207
    %v209 = vrot.slane %v64, %v208
    %v210 = vlaneseq
    %v211 = vshrl.u32 %v210, 7
    %v212 = vsub.s32 1, %v211
    %v213 = vrot.slane %v64, %v212
    %v214 = vlaneseq
    %v215 = vshrl.u32 %v214, 7
    %v216 = vsub.s32 2, %v215
    %v217 = vrot.slane %v64, %v216
    %v218 = vlaneseq
    %v219 = vshrl.u32 %v218, 7
    %v220 = vsub.s32 3, %v219
    %v221 = vrot.slane %v64, %v220
    %v222 = vlaneseq
    %v223 = vshrl.u32 %v222, 7
    %v224 = vsub.s32 4, %v223
    %v225 = vrot.slane %v64, %v224
    %v226 = vlaneseq
    %v227 = vshrl.u32 %v226, 7
    %v228 = vsub.s32 5, %v227
    %v229 = vrot.slane %v64, %v228
    %v230 = vlaneseq
    %v231 = vshrl.u32 %v230, 7
    %v232 = vsub.s32 6, %v231
    %v233 = vrot.slane %v64, %v232
    %v234 = vlaneseq
    %v235 = vshrl.u32 %v234, 7
    %v236 = vsub.s32 7, %v235
    %v237 = vrot.slane %v64, %v236
    %vm246 = vcmask 1040384
    %v247 = vsel %vm246, %v209, 0.0
    %v248 = vsel %vm246, %v213, 0.0
    %v249 = vadd.f32 %v247, %v248
    %v250 = vsel %vm246, %v217, 0.0
    %v251 = vadd.f32 %v249, %v250
    %v252 = vsel %vm246, %v221, 0.0
    %v253 = vadd.f32 %v251, %v252
    %v254 = vsel %vm246, %v225, 0.0
    %v255 = vadd.f32 %v253, %v254
    %v256 = vsel %vm246, %v229, 0.0
    %v257 = vadd.f32 %v255, %v256
    %v258 = vsel %vm246, %v233, 0.0
    %v259 = vadd.f32 %v257, %v258
    %v260 = vsel %vm246, %v237, 0.0
    %v261 = vadd.f32 %v259, %v260
    %262 = vadd.xlane.f32.xlu0 %v261
    %v263 = vpop.xlane.xlu0 %262
    %v264 = vrot.slane %v263, 4
    %v265 = vadd.f32 %v263, %v264
    %v266 = vrot.slane %v265, 2
    %v267 = vadd.f32 %v265, %v266
    %v268 = vrot.slane %v267, 1
    %v269 = vadd.f32 %v267, %v268
    %s270 = vtos %v269
    %v271 = vcombine.low %v209, %v213
    %v272 = vcombine.low %v217, %v221
    %v274 = vunpack.c.l.s4 1983009808
    %v275 = vunpack.c.0.s8 %v274
    %v276 = vlaneseq
    %v277 = vshrl.u32 %v276, 7
    %v278 = vsub.s32 %v275, %v277
    %v279 = vrot.slane %v271, %v278
    %v281 = vunpack.c.l.s4 1983009808
    %v282 = vunpack.c.0.s8 %v281
    %v283 = vlaneseq
    %v284 = vshrl.u32 %v283, 7
    %v285 = vsub.s32 %v282, %v284
    %v286 = vrot.slane %v272, %v285
    %v287 = vcombine.low %v279, %v286
    %v288 = vcombine.low %v225, %v229
    %v289 = vcombine.low %v233, %v237
    %v291 = vunpack.c.l.s4 1983009808
    %v292 = vunpack.c.0.s8 %v291
    %v293 = vlaneseq
    %v294 = vshrl.u32 %v293, 7
    %v295 = vsub.s32 %v292, %v294
    %v296 = vrot.slane %v288, %v295
    %v298 = vunpack.c.l.s4 1983009808
    %v299 = vunpack.c.0.s8 %v298
    %v300 = vlaneseq
    %v301 = vshrl.u32 %v300, 7
    %v302 = vsub.s32 %v299, %v301
    %v303 = vrot.slane %v289, %v302
    %v304 = vcombine.low %v296, %v303
    %v307 = vmul.f32 %v62, %v287
    %v308 = vmul.f32 %v63, %v304
    %v311 = vcombine.high %v307, %v307
    %v313 = vunpack.c.l.s4 1983009808
    %v314 = vunpack.c.0.s8 %v313
    %v315 = vlaneseq
    %v316 = vshrl.u32 %v315, 7
    %v317 = vsub.s32 %v314, %v316
    %v318 = vrot.slane %v307, %v317
    %v320 = vunpack.c.l.s4 1983009808
    %v321 = vunpack.c.0.s8 %v320
    %v322 = vlaneseq
    %v323 = vshrl.u32 %v322, 7
    %v324 = vsub.s32 %v321, %v323
    %v325 = vrot.slane %v311, %v324
    %v326 = vcombine.high %v318, %v318
    %v327 = vcombine.high %v325, %v325
    %v328 = vcombine.high %v308, %v308
    %v330 = vunpack.c.l.s4 1983009808
    %v331 = vunpack.c.0.s8 %v330
    %v332 = vlaneseq
    %v333 = vshrl.u32 %v332, 7
    %v334 = vsub.s32 %v331, %v333
    %v335 = vrot.slane %v308, %v334
    %v337 = vunpack.c.l.s4 1983009808
    %v338 = vunpack.c.0.s8 %v337
    %v339 = vlaneseq
    %v340 = vshrl.u32 %v339, 7
    %v341 = vsub.s32 %v338, %v340
    %v342 = vrot.slane %v328, %v341
    %v343 = vcombine.high %v335, %v335
    %v344 = vcombine.high %v342, %v342
    %v353 = vsel %vm109, %v318, 0.0
    %v354 = vsel %vm109, %v326, 0.0
    %v355 = vadd.f32 %v353, %v354
    %v356 = vsel %vm109, %v325, 0.0
    %v357 = vadd.f32 %v355, %v356
    %v358 = vsel %vm109, %v327, 0.0
    %v359 = vadd.f32 %v357, %v358
    %v360 = vsel %vm109, %v335, 0.0
    %v361 = vadd.f32 %v359, %v360
    %v362 = vsel %vm109, %v343, 0.0
    %v363 = vadd.f32 %v361, %v362
    %v364 = vsel %vm109, %v342, 0.0
    %v365 = vadd.f32 %v363, %v364
    %v366 = vsel %vm109, %v344, 0.0
    %v367 = vadd.f32 %v365, %v366
    %368 = vadd.xlane.f32.xlu0 %v367
    %v369 = vpop.xlane.xlu0 %368
    %v370 = vadd.f32 %v126, %v204
    %v371 = vstv %s270
    %v372 = vmul.f32 %v370, %v371
    %v373 = vsub.f32 %v372, %v369
    %v374 = vld [vmem:[%s2] sm:$0x1]
    %v375 = vunpack.c.l.bf16 %v374
    %v376 = vld [vmem:[#allocation7] sm:$0xff]
    %v377 = vld [vmem:[#allocation7 + $0x8] sm:$0xff]
    %v378 = vld [vmem:[#allocation7 + $0x10] sm:$0xff]
    %v379 = vld [vmem:[#allocation7 + $0x18] sm:$0xff]
    %v380 = vld [vmem:[#allocation7 + $0x20] sm:$0xff]
    %v381 = vld [vmem:[#allocation7 + $0x28] sm:$0xff]
    %v382 = vld [vmem:[#allocation7 + $0x30] sm:$0xff]
    %v383 = vld [vmem:[#allocation7 + $0x38] sm:$0xff]
    %v384 = vld [vmem:[%s4] sm:$0x1]
    %v386 = vlaneseq
    %v387 = vshrl.u32 %v386, 7
    %v388 = vsub.s32 0, %v387
    %v389 = vrot.slane %v384, %v388
    %vm391 = vcmask 523264
    %v393 = vsel %vm391, %v375, 0
    %395 = vmatprep.subr.mxu0 0.0
    %396 = vmatpush1.msra.mxu0 %v376
    %397 = vmatprep.subr.mxu0 0.0
    %398 = vmatpush1.msra.mxu0 %v377
    %399 = vmatprep.subr.mxu0 0.0
    %400 = vmatpush1.msra.mxu0 %v378
    %401 = vmatprep.subr.mxu0 0.0
    %402 = vmatpush1.msra.mxu0 %v379
    %403 = vmatprep.subr.mxu0 0.0
    %404 = vmatpush1.msra.mxu0 %v380
    %405 = vmatprep.subr.mxu0 0.0
    %406 = vmatpush1.msra.mxu0 %v381
    %407 = vmatprep.subr.mxu0 0.0
    %408 = vmatpush1.msra.mxu0 %v382
    %409 = vmatprep.subr.mxu0 0.0
    %410 = vmatpush1.msra.mxu0 %v383
    %411 = vmatprep.subr.mxu0 0.0
    %412 = vmatpush1.msra.mxu0 0.0
    %413 = vmatprep.subr.mxu0 0.0
    %414 = vmatpush1.msra.mxu0 0.0
    %415 = vmatprep.subr.mxu0 0.0
    %416 = vmatpush1.msra.mxu0 0.0
    %417 = vmatprep.subr.mxu0 0.0
    %418 = vmatpush1.msra.mxu0 0.0
    %419 = vmatprep.subr.mxu0 0.0
    %420 = vmatpush1.msra.mxu0 0.0
    %421 = vmatprep.subr.mxu0 0.0
    %422 = vmatpush1.msra.mxu0 0.0
    %423 = vmatprep.subr.mxu0 0.0
    %424 = vmatpush1.msra.mxu0 0.0
    %425 = vmatprep.subr.mxu0 0.0
    %426 = vmatpush1.msra.mxu0 0.0
    %427 = vmatprep.subr.mxu0 0.0
    %428 = vmatpush1.msra.mxu0 0.0
    %429 = vmatprep.subr.mxu0 0.0
    %430 = vmatpush1.msra.mxu0 0.0
    %431 = vmatprep.subr.mxu0 0.0
    %432 = vmatpush1.msra.mxu0 0.0
    %433 = vmatprep.subr.mxu0 0.0
    %434 = vmatpush1.msra.mxu0 0.0
    %435 = vmatprep.subr.mxu0 0.0
    %436 = vmatpush1.msra.mxu0 0.0
    %437 = vmatprep.subr.mxu0 0.0
    %438 = vmatpush1.msra.mxu0 0.0
    %439 = vmatprep.subr.mxu0 0.0
    %440 = vmatpush1.msra.mxu0 0.0
    %441 = vmatprep.subr.mxu0 0.0
    %442 = vmatpush1.msra.mxu0 0.0
    %443 = vmatprep.subr.mxu0 0.0
    %444 = vmatpush1.msra.mxu0 0.0
    %445 = vmatprep.subr.mxu0 0.0
    %446 = vmatpush1.msra.mxu0 0.0
    %447 = vmatprep.subr.mxu0 0.0
    %448 = vmatpush1.msra.mxu0 0.0
    %449 = vmatprep.subr.mxu0 0.0
    %450 = vmatpush1.msra.mxu0 0.0
    %451 = vmatprep.subr.mxu0 0.0
    %452 = vmatpush1.msra.mxu0 0.0
    %453 = vmatprep.subr.mxu0 0.0
    %454 = vmatpush1.msra.mxu0 0.0
    %455 = vmatprep.subr.mxu0 0.0
    %456 = vmatpush1.msra.mxu0 0.0
    %457 = vmatprep.subr.mxu0 0.0
    %458 = vmatpush1.msra.mxu0 0.0
    %459 = vmatprep.mubr.f32.mxu0 0.0
    %460 = vmatmul.mubr.f32.gmra.mrb[0].mxu0 %v393
    %v461 = vpop.f32.mrb[0].mxu0
    %v462 = vadd.f32 %v389, %v461
    %v463 = vpop.f32.mrb[0].mxu0
    %464 = vdwg.mxu0
    %v465 = vmax.f32 %v462, 0.0
    %v466 = vlaneseq
    %v467 = vand.u32 %v466, 127
    %vm468 = vcmp.lt.s32.totalorder %v467, 7
    %v469 = vsel %vm468, %v465, -1e+30
    %v470 = vsel %vm109, %v469, -inf
    %471 = vmax.xlane.f32.xlu0 %v470
    %v472 = vpop.xlane.xlu0 %471
    %v473 = vsub.f32 %v469, %v472
    %v474 = vmul.f32 %v473, 1.442695
    %v475 = vpow.pop %v474
    %v476 = vsel %vm109, %v475, 0.0
    %477 = vadd.xlane.f32.xlu0 %v476
    %v478 = vpop.xlane.xlu0 %477
    %v479 = vlog2.pop %v478
    %v480 = vmul.f32 %v479, 0.6931472
    %v481 = vld [vmem:[%s5] sm:$0x3]
    %482 = vset.pattern.permute.xlu0 0
    %483 = vperm.xlu0 %482, %v481
    %v484 = vpop.permute.xlu0 %483
    %vm485 = vcmp.eq.s32.totalorder %v467, %v484
    %v486 = vsel %vm485, %v469, 0.0
    %v487 = vsel %vm109, %v486, 0.0
    %488 = vadd.xlane.f32.xlu0 %v487
    %v489 = vpop.xlane.xlu0 %488
    %v490 = vadd.f32 %v472, %v480
    %v491 = vsub.f32 %v490, %v489
    %v492 = vadd.f32 %v373, %v491
    %vm493 = vcmask 1024
    %v494 = vsel %vm493, %v492, 0.0
    %495 = vadd.xlane.f32.xlu0 %v494
    %v496 = vpop.xlane.xlu0 %495
    %v497 = vrot.slane %v496, 4
    %v498 = vadd.f32 %v496, %v497
    %v499 = vrot.slane %v498, 2
    %v500 = vadd.f32 %v498, %v499
    %v501 = vrot.slane %v500, 1
    %v502 = vadd.f32 %v500, %v501
    %s503 = vtos %v502
    %v504 = vstv %s503
    %505 = vst [vmem:[#allocation8] sm:$0x1] %v504
    // Predicated region
    $region38: #{tpu_custom_call.1} parent=1 // pred_check
      _
    $region39: #{tpu_custom_call.1} parent=1 // pred_check_branch
      %507 = sbr.rel (0) target = $region41
    $region40: #{tpu_custom_call.1} parent=1 // pred_region
      %s509 = ssub.s32 16, 16
      %510 = vsyncadd [#allocation4], %s509
      %s512 = sshll.u32 [#allocation8], 4
      %s513 = int_to_ptr.vmem [resolvable:$true] %s512
      %515 = dma.vmem_to_hbm [thread:$0]  %s513, 16, %s6, [#allocation4]
    $region41: #{tpu_custom_call.1} parent=1 // pred_fallthru
      _
    // Predicated region
    $region42: #{tpu_custom_call.1} parent=1 // pred_check
      _
    $region43: #{tpu_custom_call.1} parent=1 // pred_check_branch
      %517 = sbr.rel (0) target = $region45
    $region44: #{tpu_custom_call.1} parent=1 // pred_region
      %518 = dma.done [#allocation4], 16
    $region45: #{tpu_custom_call.1} parent=1 // pred_fallthru
      _
    %519 = vsyncpa [#allocation3], 1
    %520 = vsyncpa [#allocation6], 1
    %521 = vsyncpa [#allocation4], 1

</llo_original>
